<compile_context>
chip_gen: v5e
topology: v5e:2x2
jax: 0.10.0
libtpu: 0.0.40
codegen_flags: <defaults>
</compile_context>

<pallas_src>
import functools

import jax
import jax.numpy as jnp
from jax import lax
from jax.experimental import pallas as pl
from jax.experimental.pallas import tpu as pltpu


def _round_up(n, m):
    return ((n + m - 1) // m) * m


def _ppo_kernel(x_ref, w1_ref, b1_ref, w2_ref, b2_ref, wh_ref, bh_ref,
                out_ref, *, out_dim):
    # fc1 + tanh  (MXU matmul, f32 accumulate; tanh goes to the EUP)
    h1 = jnp.tanh(
        jnp.dot(x_ref[...], w1_ref[...], preferred_element_type=jnp.float32)
        + b1_ref[...])

    # fc2 + tanh
    h2 = jnp.tanh(
        jnp.dot(h1, w2_ref[...], preferred_element_type=jnp.float32)
        + b2_ref[...])

    # Fused actor+critic head: [TB, 64] @ [64, PAD] -> [TB, PAD], lane-dense.
    heads = (jnp.dot(h2, wh_ref[...], preferred_element_type=jnp.float32)
             + bh_ref[...])

    tb, pad = out_ref.shape
    lane = lax.broadcasted_iota(jnp.int32, (tb, pad), 1)
    actor_mask = lane < out_dim

    # Numerically-stable softmax restricted to the actor lanes.
    logits = jnp.where(actor_mask, heads, -jnp.inf)
    m = jnp.max(logits, axis=-1, keepdims=True)
    e = jnp.where(actor_mask, jnp.exp(logits - m), 0.0)
    denom = jnp.sum(e, axis=-1, keepdims=True)
    probs = e * pl.reciprocal(denom, approx=False)   # exact; EUP slot

    # Pack the critic value into lane `out_dim` (probs are 0 there, value is 0
    # in actor lanes), producing one lane-dense (TB, PAD) store.
    value_lane = jnp.where(lane == out_dim, heads, 0.0)
    out_ref[...] = (probs + value_lane).astype(out_ref.dtype)


def ppo_actor_critic_forward(x, params, *, block_b=512):
    """Fused PPOActorCritic forward pass as one batch-tiled Pallas kernel."""
    w1, b1, w2, b2, wa, ba, wc, bc = params
    B, input_dim = x.shape
    hidden = w1.shape[1]
    out_dim = wa.shape[1]

    # Fuse actor + critic into one lane-dense head weight [hidden, PAD].
    pad = _round_up(out_dim + 1, 128)
    wh = jnp.zeros((hidden, pad), jnp.float32)
    wh = wh.at[:, :out_dim].set(wa)
    wh = wh.at[:, out_dim:out_dim + 1].set(wc)
    bh = jnp.zeros((1, pad), jnp.float32)
    bh = bh.at[:, :out_dim].set(ba.reshape(1, -1))
    bh = bh.at[:, out_dim:out_dim + 1].set(bc.reshape(1, -1))

    # Batch tile: multiple of 8 sublanes, capped at block_b; pad B to a
    # multiple of the tile so the grid divides evenly.
    tb = min(block_b, _round_up(B, 8))
    bp = _round_up(B, tb)
    if bp != B:
        x = jnp.pad(x, ((0, bp - B), (0, 0)))

    full = lambda a: pl.BlockSpec(a.shape, lambda i: (0,) * a.ndim)

    out = pl.pallas_call(
        functools.partial(_ppo_kernel, out_dim=out_dim),
        out_shape=jax.ShapeDtypeStruct((bp, pad), jnp.float32),
        grid=(bp // tb,),
        in_specs=[
            pl.BlockSpec((tb, input_dim), lambda i: (i, 0)),  # x: batch-tiled
            full(w1), full(b1), full(w2), full(b2),           # weights resident
            full(wh), full(bh),
        ],
        out_specs=pl.BlockSpec((tb, pad), lambda i: (i, 0)),
        compiler_params=pltpu.CompilerParams(
            dimension_semantics=("parallel",),
            vmem_limit_bytes=64 << 20,
        ),
    )(x, w1, b1, w2, b2, wh, bh)

    probs = out[:B, :out_dim]
    value = out[:B, out_dim:out_dim + 1]
    return probs, value


def init_params(key, input_dim, output_dim, hidden=64):
    """Deterministic init mimicking torch.nn.Linear default
    (U[-1/sqrt(fan_in), 1/sqrt(fan_in)]). Weights stored as [in, out]."""
    ks = jax.random.split(key, 8)

    def linear(kw, kb, fan_in, fan_out):
        bound = 1.0 / jnp.sqrt(jnp.float32(fan_in))
        w = jax.random.uniform(kw, (fan_in, fan_out), jnp.float32, -bound, bound)
        b = jax.random.uniform(kb, (1, fan_out), jnp.float32, -bound, bound)
        return w, b

    w1, b1 = linear(ks[0], ks[1], input_dim, hidden)
    w2, b2 = linear(ks[2], ks[3], hidden, hidden)
    wa, ba = linear(ks[4], ks[5], hidden, output_dim)
    wc, bc = linear(ks[6], ks[7], hidden, 1)
    return (w1, b1, w2, b2, wa, ba, wc, bc)


def reference_forward(x, params):
    """Pure-JAX reference for validation."""
    w1, b1, w2, b2, wa, ba, wc, bc = params
    h1 = jnp.tanh(x @ w1 + b1)
    h2 = jnp.tanh(h1 @ w2 + b2)
    probs = jax.nn.softmax(h2 @ wa + ba, axis=-1)
    value = h2 @ wc + bc
    return probs, value


if __name__ == "__main__":
    key = jax.random.PRNGKey(0)
    k_x, k_p = jax.random.split(key)

    batch = 8
    input_dim = 32
    output_dim = 8

    x = jax.random.normal(k_x, (batch, input_dim), jnp.float32)
    params = init_params(k_p, input_dim, output_dim)

    probs, value = ppo_actor_critic_forward(x, params)
    probs = jax.block_until_ready(probs)
    value = jax.block_until_ready(value)

    # sanity check against pure-JAX reference
    ref_probs, ref_value = reference_forward(x, params)
    assert probs.shape == (batch, output_dim)
    assert value.shape == (batch, 1)
    assert jnp.allclose(probs, ref_probs, atol=1e-5, rtol=1e-5)
    assert jnp.allclose(value, ref_value, atol=1e-5, rtol=1e-5)
    assert jnp.allclose(jnp.sum(probs, axis=-1), 1.0, atol=1e-5)

    print("KERNEL_OK")
</pallas_src>

<mosaic_0001>
module attributes {stable_mosaic.version = 11 : i64} {
  func.func @_ppo_kernel(%arg0: i32, %arg1: memref<8x32xf32, #tpu.memory_space<vmem>>, %arg2: memref<32x64xf32, #tpu.memory_space<vmem>>, %arg3: memref<1x64xf32, #tpu.memory_space<vmem>>, %arg4: memref<64x64xf32, #tpu.memory_space<vmem>>, %arg5: memref<1x64xf32, #tpu.memory_space<vmem>>, %arg6: memref<64x128xf32, #tpu.memory_space<vmem>>, %arg7: memref<1x128xf32, #tpu.memory_space<vmem>>, %arg8: memref<8x128xf32, #tpu.memory_space<vmem>>) attributes {dimension_semantics = [#tpu.dimension_semantics<parallel>], iteration_bounds = array<i64: 1>, scalar_prefetch = 0 : i64, scratch_operands = 0 : i64, tpu.core_type = #tpu.core_type<tc>, window_params = [{transform_indices = @transform_0, window_bounds = array<i64: 8, 32>}, {pipeline_mode = #tpu.pipeline_mode<synchronous>, transform_indices = @transform_1, window_bounds = array<i64: 32, 64>}, {pipeline_mode = #tpu.pipeline_mode<synchronous>, transform_indices = @transform_2, window_bounds = array<i64: 1, 64>}, {pipeline_mode = #tpu.pipeline_mode<synchronous>, transform_indices = @transform_3, window_bounds = array<i64: 64, 64>}, {pipeline_mode = #tpu.pipeline_mode<synchronous>, transform_indices = @transform_4, window_bounds = array<i64: 1, 64>}, {pipeline_mode = #tpu.pipeline_mode<synchronous>, transform_indices = @transform_5, window_bounds = array<i64: 64, 128>}, {pipeline_mode = #tpu.pipeline_mode<synchronous>, transform_indices = @transform_6, window_bounds = array<i64: 1, 128>}, {transform_indices = @transform_7, window_bounds = array<i64: 8, 128>}]} {
    %c0 = arith.constant 0 : index
    %c0_0 = arith.constant 0 : index
    %0 = vector.load %arg1[%c0, %c0_0] : memref<8x32xf32, #tpu.memory_space<vmem>>, vector<8x32xf32>
    %c0_1 = arith.constant 0 : index
    %c0_2 = arith.constant 0 : index
    %1 = vector.load %arg2[%c0_1, %c0_2] : memref<32x64xf32, #tpu.memory_space<vmem>>, vector<32x64xf32>
    %cst = arith.constant dense<0.000000e+00> : vector<8x64xf32>
    %2 = tpu.matmul %0, %1, %cst {dimension_numbers = #tpu.dot_dimension_numbers<[1], [0], [0], [1], [0, 0, 1, 1], [], []>} : vector<8x32xf32>, vector<32x64xf32>, vector<8x64xf32> -> vector<8x64xf32>
    %c0_3 = arith.constant 0 : index
    %c0_4 = arith.constant 0 : index
    %3 = vector.load %arg3[%c0_3, %c0_4] : memref<1x64xf32, #tpu.memory_space<vmem>>, vector<1x64xf32>
    %4 = vector.broadcast %3 : vector<1x64xf32> to vector<8x64xf32>
    %5 = arith.addf %2, %4 : vector<8x64xf32>
    %6 = math.tanh %5 : vector<8x64xf32>
    %c0_5 = arith.constant 0 : index
    %c0_6 = arith.constant 0 : index
    %7 = vector.load %arg4[%c0_5, %c0_6] : memref<64x64xf32, #tpu.memory_space<vmem>>, vector<64x64xf32>
    %cst_7 = arith.constant dense<0.000000e+00> : vector<8x64xf32>
    %8 = tpu.matmul %6, %7, %cst_7 {dimension_numbers = #tpu.dot_dimension_numbers<[1], [0], [0], [1], [0, 0, 1, 1], [], []>} : vector<8x64xf32>, vector<64x64xf32>, vector<8x64xf32> -> vector<8x64xf32>
    %c0_8 = arith.constant 0 : index
    %c0_9 = arith.constant 0 : index
    %9 = vector.load %arg5[%c0_8, %c0_9] : memref<1x64xf32, #tpu.memory_space<vmem>>, vector<1x64xf32>
    %10 = vector.broadcast %9 : vector<1x64xf32> to vector<8x64xf32>
    %11 = arith.addf %8, %10 : vector<8x64xf32>
    %12 = math.tanh %11 : vector<8x64xf32>
    %c0_10 = arith.constant 0 : index
    %c0_11 = arith.constant 0 : index
    %13 = vector.load %arg6[%c0_10, %c0_11] : memref<64x128xf32, #tpu.memory_space<vmem>>, vector<64x128xf32>
    %cst_12 = arith.constant dense<0.000000e+00> : vector<8x128xf32>
    %14 = tpu.matmul %12, %13, %cst_12 {dimension_numbers = #tpu.dot_dimension_numbers<[1], [0], [0], [1], [0, 0, 1, 1], [], []>} : vector<8x64xf32>, vector<64x128xf32>, vector<8x128xf32> -> vector<8x128xf32>
    %c0_13 = arith.constant 0 : index
    %c0_14 = arith.constant 0 : index
    %15 = vector.load %arg7[%c0_13, %c0_14] : memref<1x128xf32, #tpu.memory_space<vmem>>, vector<1x128xf32>
    %16 = vector.broadcast %15 : vector<1x128xf32> to vector<8x128xf32>
    %17 = arith.addf %14, %16 : vector<8x128xf32>
    %18 = tpu.iota {dimensions = array<i32: 1>} : vector<8x128xi32>
    %c8_i32 = arith.constant 8 : i32
    %19 = vector.broadcast %c8_i32 : i32 to vector<8x128xi32>
    %20 = arith.cmpi slt, %18, %19 : vector<8x128xi32>
    %cst_15 = arith.constant 0xFF800000 : f32
    %21 = vector.broadcast %cst_15 : f32 to vector<8x128xf32>
    %22 = arith.select %20, %17, %21 : vector<8x128xi1>, vector<8x128xf32>
    %cst_16 = arith.constant dense<0xFF800000> : vector<8xf32>
    %23 = vector.multi_reduction <maximumf>, %22, %cst_16 [1] : vector<8x128xf32> to vector<8xf32>
    %24 = vector.shape_cast %23 : vector<8xf32> to vector<8x1xf32>
    %25 = vector.broadcast %24 : vector<8x1xf32> to vector<8x128xf32>
    %26 = arith.subf %22, %25 : vector<8x128xf32>
    %27 = math.exp %26 : vector<8x128xf32>
    %cst_17 = arith.constant 0.000000e+00 : f32
    %28 = vector.broadcast %cst_17 : f32 to vector<8x128xf32>
    %29 = arith.select %20, %27, %28 : vector<8x128xi1>, vector<8x128xf32>
    %cst_18 = arith.constant dense<0.000000e+00> : vector<8xf32>
    %30 = vector.multi_reduction <add>, %29, %cst_18 [1] : vector<8x128xf32> to vector<8xf32>
    %31 = vector.shape_cast %30 : vector<8xf32> to vector<8x1xf32>
    %32 = tpu.reciprocal %31 : vector<8x1xf32> -> vector<8x1xf32>
    %33 = vector.broadcast %32 : vector<8x1xf32> to vector<8x128xf32>
    %34 = arith.mulf %29, %33 : vector<8x128xf32>
    %c8_i32_19 = arith.constant 8 : i32
    %35 = vector.broadcast %c8_i32_19 : i32 to vector<8x128xi32>
    %36 = arith.cmpi eq, %18, %35 : vector<8x128xi32>
    %cst_20 = arith.constant 0.000000e+00 : f32
    %37 = vector.broadcast %cst_20 : f32 to vector<8x128xf32>
    %38 = arith.select %36, %17, %37 : vector<8x128xi1>, vector<8x128xf32>
    %39 = arith.addf %34, %38 : vector<8x128xf32>
    %c0_21 = arith.constant 0 : index
    %c0_22 = arith.constant 0 : index
    %40 = vector.load %arg8[%c0_21, %c0_22] : memref<8x128xf32, #tpu.memory_space<vmem>>, vector<8x128xf32>
    tpu.vector_store %arg8[%c0_21, %c0_22], %39 {strides = array<i32>} : memref<8x128xf32, #tpu.memory_space<vmem>>, vector<8x128xf32>,
    return
  }
  func.func @transform_0(%arg0: i32) -> (i32, i32) {
    %c0_i32 = arith.constant 0 : i32
    %c0_i32_0 = arith.constant 0 : i32
    return %arg0, %c0_i32 : i32, i32
  }
  func.func @transform_1(%arg0: i32) -> (i32, i32) {
    %c0_i32 = arith.constant 0 : i32
    %c0_i32_0 = arith.constant 0 : i32
    %c0_i32_1 = arith.constant 0 : i32
    return %c0_i32, %c0_i32_0 : i32, i32
  }
  func.func @transform_2(%arg0: i32) -> (i32, i32) {
    %c0_i32 = arith.constant 0 : i32
    %c0_i32_0 = arith.constant 0 : i32
    %c0_i32_1 = arith.constant 0 : i32
    return %c0_i32, %c0_i32_0 : i32, i32
  }
  func.func @transform_3(%arg0: i32) -> (i32, i32) {
    %c0_i32 = arith.constant 0 : i32
    %c0_i32_0 = arith.constant 0 : i32
    %c0_i32_1 = arith.constant 0 : i32
    return %c0_i32, %c0_i32_0 : i32, i32
  }
  func.func @transform_4(%arg0: i32) -> (i32, i32) {
    %c0_i32 = arith.constant 0 : i32
    %c0_i32_0 = arith.constant 0 : i32
    %c0_i32_1 = arith.constant 0 : i32
    return %c0_i32, %c0_i32_0 : i32, i32
  }
  func.func @transform_5(%arg0: i32) -> (i32, i32) {
    %c0_i32 = arith.constant 0 : i32
    %c0_i32_0 = arith.constant 0 : i32
    %c0_i32_1 = arith.constant 0 : i32
    return %c0_i32, %c0_i32_0 : i32, i32
  }
  func.func @transform_6(%arg0: i32) -> (i32, i32) {
    %c0_i32 = arith.constant 0 : i32
    %c0_i32_0 = arith.constant 0 : i32
    %c0_i32_1 = arith.constant 0 : i32
    return %c0_i32, %c0_i32_0 : i32, i32
  }
  func.func @transform_7(%arg0: i32) -> (i32, i32) {
    %c0_i32 = arith.constant 0 : i32
    %c0_i32_0 = arith.constant 0 : i32
    return %arg0, %c0_i32 : i32, i32
  }
}

</mosaic_0001>

<llo_original>
// kernel: tpu_custom_call.1
$region0: #{tpu_custom_call.1}
  #allocation0 [shape = 'u32[]', space=smem, size = 0x4, offset = 0x4, fixed_abs, tag = 'smem constant byte address 0x4 - core index']
  #allocation1 [shape = 'u32[72,128]{1,0:T(1,128)}', space=vmem, size = 0x9000, scoped, tag = 'internal scratch']
  %s0 = inlined_call_operand.hbm [shape: f32[8,32], index: 0, kind: input, shape index: {}]
  %s1 = inlined_call_operand.hbm [shape: f32[32,64], index: 1, kind: input, shape index: {}]
  %s2 = inlined_call_operand.vmem [shape: f32[1,64], index: 2, kind: input, shape index: {}]
  %s3 = inlined_call_operand.hbm [shape: f32[64,64], index: 3, kind: input, shape index: {}]
  %s4 = inlined_call_operand.vmem [shape: f32[1,64], index: 4, kind: input, shape index: {}]
  %s5 = inlined_call_operand.hbm [shape: f32[64,128], index: 5, kind: input, shape index: {}]
  %s6 = inlined_call_operand.vmem [shape: f32[1,128], index: 6, kind: input, shape index: {}]
  %s7 = inlined_call_operand.hbm [shape: f32[8,128], index: 7, kind: output, shape index: {}]
  %s8 = sld [smem:[#allocation0]]
  $region54: #{tpu_custom_call.1} parent=0
    _
  %s10 = ssub.s32 1, %s8
  %s11 = scalar_select 0, %s10, %s8
  $region1: #{tpu_custom_call.1} parent=0
    #allocation2 [shape = 'u8[4096]{0}', space=vmem, size = 0x1000, scoped, tag = 'input window, operand 0, single buffered']
    #allocation3 [shape = 's32[1]{0}', space=sflag, size = 0x4, scoped, tag = 'scoped memory for tpu_custom_call.1']
    #allocation4 [shape = 's32[1]{0}', space=sflag, size = 0x4, scoped, tag = 'scoped memory for tpu_custom_call.1']
    #allocation5 [shape = 'u8[16384]{0}', space=vmem, size = 0x4000, scoped, tag = 'input window, operand 1, single buffered']
    #allocation6 [shape = 's32[1]{0}', space=sflag, size = 0x4, scoped, tag = 'scoped memory for tpu_custom_call.1']
    #allocation7 [shape = 'u8[32768]{0}', space=vmem, size = 0x8000, scoped, tag = 'input window, operand 3, single buffered']
    #allocation8 [shape = 'u8[32768]{0}', space=vmem, size = 0x8000, scoped, tag = 'input window, operand 5, single buffered']
    #allocation9 [shape = 's32[1]{0}', space=sflag, size = 0x4, scoped, tag = 'scoped memory for tpu_custom_call.1']
    #allocation10 [shape = 'u8[4096]{0}', space=vmem, size = 0x1000, scoped, tag = 'output window, operand 0, single buffered']
    %12 = vsyncpa [#allocation3], 0
    %13 = vsyncpa [#allocation6], 0
    %14 = vsyncpa [#allocation9], 0
    %15 = vsyncpa [#allocation4], 0
    // Predicated region
    $region2: #{tpu_custom_call.1} parent=1 // pred_check
      _
    $region3: #{tpu_custom_call.1} parent=1 // pred_check_branch
      %17 = sbr.rel (0) target = $region5
    $region4: #{tpu_custom_call.1} parent=1 // pred_region
      %19 = vsyncadd [#allocation3], 0
      %s21 = sshll.u32 %s0, 4
      %s22 = int_to_ptr.hbm [resolvable:$true] %s21
      %s23 = sshll.u32 [#allocation2], 4
      %s24 = int_to_ptr.vmem [resolvable:$true] %s23
      %26 = dma.hbm_to_vmem [thread:$0]  %s22, 128, %s24, [#allocation3]
    $region5: #{tpu_custom_call.1} parent=1 // pred_fallthru
      _
    // Predicated region
    $region6: #{tpu_custom_call.1} parent=1 // pred_check
      _
    $region7: #{tpu_custom_call.1} parent=1 // pred_check_branch
      %28 = sbr.rel (0) target = $region9
    $region8: #{tpu_custom_call.1} parent=1 // pred_region
      %30 = vsyncadd [#allocation6], 0
      %s31 = sshll.u32 %s1, 4
      %s32 = int_to_ptr.hbm [resolvable:$true] %s31
      %s33 = sshll.u32 [#allocation5], 4
      %s34 = int_to_ptr.vmem [resolvable:$true] %s33
      %39 = dma.hbm_to_vmem [thread:$0]  %s32, 512, %s34, [#allocation6], 128, 128, 8
    $region9: #{tpu_custom_call.1} parent=1 // pred_fallthru
      _
    // Predicated region
    $region10: #{tpu_custom_call.1} parent=1 // pred_check
      _
    $region11: #{tpu_custom_call.1} parent=1 // pred_check_branch
      %41 = sbr.rel (0) target = $region13
    $region12: #{tpu_custom_call.1} parent=1 // pred_region
      _
    $region13: #{tpu_custom_call.1} parent=1 // pred_fallthru
      _
    // Predicated region
    $region14: #{tpu_custom_call.1} parent=1 // pred_check
      _
    $region15: #{tpu_custom_call.1} parent=1 // pred_check_branch
      %43 = sbr.rel (0) target = $region17
    $region16: #{tpu_custom_call.1} parent=1 // pred_region
      %45 = vsyncadd [#allocation6], 0
      %s46 = sshll.u32 %s3, 4
      %s47 = int_to_ptr.hbm [resolvable:$true] %s46
      %s48 = sshll.u32 [#allocation7], 4
      %s49 = int_to_ptr.vmem [resolvable:$true] %s48
      %54 = dma.hbm_to_vmem [thread:$0]  %s47, 1024, %s49, [#allocation6], 128, 128, 8
    $region17: #{tpu_custom_call.1} parent=1 // pred_fallthru
      _
    // Predicated region
    $region18: #{tpu_custom_call.1} parent=1 // pred_check
      _
    $region19: #{tpu_custom_call.1} parent=1 // pred_check_branch
      %56 = sbr.rel (0) target = $region21
    $region20: #{tpu_custom_call.1} parent=1 // pred_region
      _
    $region21: #{tpu_custom_call.1} parent=1 // pred_fallthru
      _
    // Predicated region
    $region22: #{tpu_custom_call.1} parent=1 // pred_check
      _
    $region23: #{tpu_custom_call.1} parent=1 // pred_check_branch
      %58 = sbr.rel (0) target = $region25
    $region24: #{tpu_custom_call.1} parent=1 // pred_region
      %60 = vsyncadd [#allocation9], 0
      %s61 = sshll.u32 %s5, 4
      %s62 = int_to_ptr.hbm [resolvable:$true] %s61
      %s63 = sshll.u32 [#allocation8], 4
      %s64 = int_to_ptr.vmem [resolvable:$true] %s63
      %69 = dma.hbm_to_vmem [thread:$0]  %s62, 1024, %s64, [#allocation9], 128, 128, 8
    $region25: #{tpu_custom_call.1} parent=1 // pred_fallthru
      _
    // Predicated region
    $region26: #{tpu_custom_call.1} parent=1 // pred_check
      _
    $region27: #{tpu_custom_call.1} parent=1 // pred_check_branch
      %71 = sbr.rel (0) target = $region29
    $region28: #{tpu_custom_call.1} parent=1 // pred_region
      _
    $region29: #{tpu_custom_call.1} parent=1 // pred_fallthru
      _
    // Predicated region
    $region30: #{tpu_custom_call.1} parent=1 // pred_check
      _
    $region31: #{tpu_custom_call.1} parent=1 // pred_check_branch
      %73 = sbr.rel (0) target = $region33
    $region32: #{tpu_custom_call.1} parent=1 // pred_region
      %75 = dma.done [#allocation3], 128
    $region33: #{tpu_custom_call.1} parent=1 // pred_fallthru
      _
    // Predicated region
    $region34: #{tpu_custom_call.1} parent=1 // pred_check
      _
    $region35: #{tpu_custom_call.1} parent=1 // pred_check_branch
      %77 = sbr.rel (0) target = $region37
    $region36: #{tpu_custom_call.1} parent=1 // pred_region
      %79 = dma.done [#allocation6], 512
    $region37: #{tpu_custom_call.1} parent=1 // pred_fallthru
      _
    // Predicated region
    $region38: #{tpu_custom_call.1} parent=1 // pred_check
      _
    $region39: #{tpu_custom_call.1} parent=1 // pred_check_branch
      %81 = sbr.rel (0) target = $region41
    $region40: #{tpu_custom_call.1} parent=1 // pred_region
      %83 = dma.done [#allocation6], 1024
    $region41: #{tpu_custom_call.1} parent=1 // pred_fallthru
      _
    // Predicated region
    $region42: #{tpu_custom_call.1} parent=1 // pred_check
      _
    $region43: #{tpu_custom_call.1} parent=1 // pred_check_branch
      %85 = sbr.rel (0) target = $region45
    $region44: #{tpu_custom_call.1} parent=1 // pred_region
      %87 = dma.done [#allocation9], 1024
    $region45: #{tpu_custom_call.1} parent=1 // pred_fallthru
      _
    %v88 = vld [vmem:[#allocation2] sm:$0xff]
    %v89 = vld [vmem:[#allocation5] sm:$0xff]
    %v90 = vld [vmem:[#allocation5 + $0x8] sm:$0xff]
    %v91 = vld [vmem:[#allocation5 + $0x10] sm:$0xff]
    %v92 = vld [vmem:[#allocation5 + $0x18] sm:$0xff]
    %v93 = vld [vmem:[%s2] sm:$0x1]
    %v95 = vperm.slane %v93, 0
    %vm97 = vcmask 261120
    %v99 = vsel %vm97, %v88, 0
    %101 = vmatpush.msra.mxu0 0.0
    %102 = vmatpush.msra.mxu0 0.0
    %103 = vmatpush.msra.mxu0 0.0
    %104 = vmatpush.msra.mxu0 0.0
    %105 = vmatpush.msra.mxu0 0.0
    %106 = vmatpush.msra.mxu0 0.0
    %107 = vmatpush.msra.mxu0 0.0
    %108 = vmatpush.msra.mxu0 0.0
    %109 = vmatpush.msra.mxu0 0.0
    %110 = vmatpush.msra.mxu0 0.0
    %111 = vmatpush.msra.mxu0 0.0
    %112 = vmatpush.msra.mxu0 0.0
    %113 = vmatpush.msra.mxu0 %v92
    %114 = vmatpush.msra.mxu0 %v91
    %115 = vmatpush.msra.mxu0 %v90
    %116 = vmatpush.msra.mxu0 %v89
    %117 = vmatmul.f32.gmra.mxu0 %v99
    %v118 = vpop.f32.mrf.mxu0
    %v119 = vadd.f32 %v95, %v118
    %120 = vdwg.mxu0
    %v121 = vtanh.pop %v119
    %v122 = vld [vmem:[#allocation7] sm:$0xff]
    %v123 = vld [vmem:[#allocation7 + $0x8] sm:$0xff]
    %v124 = vld [vmem:[#allocation7 + $0x10] sm:$0xff]
    %v125 = vld [vmem:[#allocation7 + $0x18] sm:$0xff]
    %v126 = vld [vmem:[#allocation7 + $0x20] sm:$0xff]
    %v127 = vld [vmem:[#allocation7 + $0x28] sm:$0xff]
    %v128 = vld [vmem:[#allocation7 + $0x30] sm:$0xff]
    %v129 = vld [vmem:[#allocation7 + $0x38] sm:$0xff]
    %v130 = vld [vmem:[%s4] sm:$0x1]
    %v132 = vperm.slane %v130, 0
    %vm134 = vcmask 523264
    %v136 = vsel %vm134, %v121, 0
    %138 = vmatpush.msra.mxu0 0.0
    %139 = vmatpush.msra.mxu0 0.0
    %140 = vmatpush.msra.mxu0 0.0
    %141 = vmatpush.msra.mxu0 0.0
    %142 = vmatpush.msra.mxu0 0.0
    %143 = vmatpush.msra.mxu0 0.0
    %144 = vmatpush.msra.mxu0 0.0
    %145 = vmatpush.msra.mxu0 0.0
    %146 = vmatpush.msra.mxu0 %v129
    %147 = vmatpush.msra.mxu0 %v128
    %148 = vmatpush.msra.mxu0 %v127
    %149 = vmatpush.msra.mxu0 %v126
    %150 = vmatpush.msra.mxu0 %v125
    %151 = vmatpush.msra.mxu0 %v124
    %152 = vmatpush.msra.mxu0 %v123
    %153 = vmatpush.msra.mxu0 %v122
    %154 = vmatmul.f32.gmra.mxu0 %v136
    %v155 = vpop.f32.mrf.mxu0
    %v156 = vadd.f32 %v132, %v155
    %157 = vdwg.mxu0
    %v158 = vtanh.pop %v156
    %v159 = vld [vmem:[#allocation8] sm:$0xff]
    %v160 = vld [vmem:[#allocation8 + $0x8] sm:$0xff]
    %v161 = vld [vmem:[#allocation8 + $0x10] sm:$0xff]
    %v162 = vld [vmem:[#allocation8 + $0x18] sm:$0xff]
    %v163 = vld [vmem:[#allocation8 + $0x20] sm:$0xff]
    %v164 = vld [vmem:[#allocation8 + $0x28] sm:$0xff]
    %v165 = vld [vmem:[#allocation8 + $0x30] sm:$0xff]
    %v166 = vld [vmem:[#allocation8 + $0x38] sm:$0xff]
    %v167 = vld [vmem:[%s6] sm:$0x1]
    %v169 = vperm.slane %v167, 0
    %v172 = vsel %vm134, %v158, 0
    %174 = vmatpush.msra.mxu0 0.0
    %175 = vmatpush.msra.mxu0 0.0
    %176 = vmatpush.msra.mxu0 0.0
    %177 = vmatpush.msra.mxu0 0.0
    %178 = vmatpush.msra.mxu0 0.0
    %179 = vmatpush.msra.mxu0 0.0
    %180 = vmatpush.msra.mxu0 0.0
    %181 = vmatpush.msra.mxu0 0.0
    %182 = vmatpush.msra.mxu0 %v166
    %183 = vmatpush.msra.mxu0 %v165
    %184 = vmatpush.msra.mxu0 %v164
    %185 = vmatpush.msra.mxu0 %v163
    %186 = vmatpush.msra.mxu0 %v162
    %187 = vmatpush.msra.mxu0 %v161
    %188 = vmatpush.msra.mxu0 %v160
    %189 = vmatpush.msra.mxu0 %v159
    %190 = vmatmul.f32.gmra.mxu0 %v172
    %v191 = vpop.f32.mrf.mxu0
    %v192 = vadd.f32 %v169, %v191
    %193 = vdwg.mxu0
    %v194 = vlaneseq
    %v195 = vand.u32 %v194, 127
    %vm196 = vcmp.lt.s32.totalorder %v195, 8
    %v197 = vsel %vm196, %v192, -inf
    %198 = vmax.xlane.f32.xlu0 %v197
    %v199 = vpop.xlane.xlu0 %198
    %v200 = vsub.f32 %v197, %v199
    %v201 = vmul.f32 %v200, 1.442695
    %v202 = vpow.pop %v201
    %v203 = vsel %vm196, %v202, 0.0
    %204 = vadd.xlane.f32.xlu0 %v203
    %v205 = vpop.xlane.xlu0 %204
    %v206 = vrcp.pop %v205
    %v207 = vmul.f32 %v205, %v206
    %v208 = vsub.f32 1.0, %v207
    %v209 = vmul.f32 %v206, %v208
    %v210 = vadd.f32 %v206, %v209
    %vm211 = vweird.f32 %v205
    %vm212 = vweird.f32 %v206
    %vm213 = vmor %vm211, %vm212
    %v214 = vsel %vm213, %v206, %v210
    %v215 = vand.u32 2147483647, %v205
    %vm216 = vcmp.eq.f32.partialorder %v215, 8.507059e+37
    %v217 = vand.u32 %v205, 2147483648
    %v218 = vor.u32 1.1754944e-38, %v217
    %v219 = vsel %vm216, %v218, %v214
    %v220 = vmul.f32 %v203, %v219
    %vm221 = vcmp.eq.s32.totalorder %v195, 8
    %v222 = vsel %vm221, %v192, 0.0
    %v223 = vadd.f32 %v220, %v222
    %224 = vst [vmem:[#allocation10] sm:$0xff] %v223
    // Predicated region
    $region46: #{tpu_custom_call.1} parent=1 // pred_check
      _
    $region47: #{tpu_custom_call.1} parent=1 // pred_check_branch
      %226 = sbr.rel (0) target = $region49
    $region48: #{tpu_custom_call.1} parent=1 // pred_region
      %228 = vsyncadd [#allocation4], 0
      %s230 = sshll.u32 [#allocation10], 4
      %s231 = int_to_ptr.vmem [resolvable:$true] %s230
      %s232 = sshll.u32 %s7, 4
      %s233 = int_to_ptr.hbm [resolvable:$true] %s232
      %235 = dma.vmem_to_hbm [thread:$0]  %s231, 128, %s233, [#allocation4]
    $region49: #{tpu_custom_call.1} parent=1 // pred_fallthru
      _
    // Predicated region
    $region50: #{tpu_custom_call.1} parent=1 // pred_check
      _
    $region51: #{tpu_custom_call.1} parent=1 // pred_check_branch
      %237 = sbr.rel (0) target = $region53
    $region52: #{tpu_custom_call.1} parent=1 // pred_region
      %239 = dma.done [#allocation4], 128
    $region53: #{tpu_custom_call.1} parent=1 // pred_fallthru
      _
    %240 = vsyncpa [#allocation3], 1
    %241 = vsyncpa [#allocation6], 1
    %242 = vsyncpa [#allocation9], 1
    %243 = vsyncpa [#allocation4], 1

</llo_original>
